<compile_context>
chip_gen: v7x
topology: tpu7x:2x2x1
jax: 0.10.0
libtpu: 0.0.40
codegen_flags: <defaults>
</compile_context>

<pallas_src>
import math

import jax
import jax.numpy as jnp
import numpy as np
from jax.experimental import pallas as pl
from jax.experimental.pallas import tpu as pltpu


def _vmem_capacity_bytes():
    """Physical VMEM per TensorCore; conservative 64 MiB (v7x-sized) fallback."""
    try:
        cap = int(pltpu.get_tpu_info().vmem_capacity_bytes)
        if cap >= (16 << 20):
            return cap
    except Exception:
        pass
    return 64 << 20


def _probe_roll_mode():
    """Detect pltpu.roll availability + sign convention with a tiny kernel.

    Returns +1 if pltpu.roll matches jnp.roll (out[i] = in[i - shift]),
    -1 for the opposite convention, 0 if unusable (kernel falls back to
    jnp.roll, which lowers to sublane concatenates — correct either way).
    """
    try:
        def k(x_ref, o_ref):
            o_ref[...] = pltpu.roll(x_ref[...], 1, 0)

        x = jnp.arange(8 * 128, dtype=jnp.float32).reshape(8, 128)
        out = np.asarray(jax.block_until_ready(
            pl.pallas_call(k, out_shape=jax.ShapeDtypeStruct((8, 128), jnp.float32))(x)))
        xn = np.asarray(x)
        if np.array_equal(out, np.roll(xn, 1, axis=0)):
            return 1
        if np.array_equal(out, np.roll(xn, -1, axis=0)):
            return -1
    except Exception:
        pass
    return 0


def make_phrase_embed(phrase_gram_num, embed_size, seq_len, batch,
                      block_batch=None, compute_dtype=jnp.float32):
    G, E, S, B = phrase_gram_num, embed_size, seq_len, batch
    pads = [int(math.ceil(((g + 1) - 1) / 2.0)) for g in range(G)]
    # Distinct sequence shifts d = tap_k - pad_g used by any gram.
    shifts = sorted({k - pads[g] for g in range(G) for k in range(g + 1)})
    D = len(shifts)
    cbytes = jnp.dtype(compute_dtype).itemsize

    roll_mode = _probe_roll_mode() if any(d != 0 for d in shifts) else 1

    # ---- per-grid-step VMEM estimate (bytes), used to size Bt --------------
    def vmem_est(bt):
        M = bt * S
        x_io = 2 * bt * S * E * 4                 # input double buffer (f32)
        w_io = 2 * D * E * G * E * cbytes         # packed weight (2 bufs, const map)
        b_io = 2 * G * E * 4                      # packed bias
        o_io = 2 * bt * E * 4                     # output double buffer
        acc = M * G * E * 4                       # f32 accumulator value
        tmp = M * E * (3 * max(4, cbytes) + 8)    # cast / rolled / masked / iota
        return x_io + w_io + b_io + o_io + acc + tmp

    vmem_cap = _vmem_capacity_bytes()
    budget = vmem_cap // 3                        # headroom for Mosaic internals

    if block_batch is not None:
        assert B % block_batch == 0, "block_batch must divide batch"
        Bt = block_batch
    else:
        # Legal tiles: divide B and keep the (Bt, E) output block legal
        # (sublane dim multiple of 8, or the whole batch).
        divs = [d for d in range(1, B + 1) if B % d == 0 and (d % 8 == 0 or d == B)]
        fits = [d for d in divs if vmem_est(d) <= budget] or [min(divs)]
        tier1 = [d for d in fits if d * S >= 256 and B // d >= 2]  # MXU fill + 2 TCs
        tier2 = [d for d in fits if B // d >= 2]                   # >=2 steps for v7x
        Bt = max(tier1) if tier1 else (max(tier2) if tier2 else max(fits))

    M = Bt * S
    vmem_limit = int(min(vmem_cap, max(32 << 20, 2 * vmem_est(Bt))))

    def kernel(x_ref, w_ref, b_ref, o_ref):
        # x_ref: (Bt, S, E)   input rows (f32)
        # w_ref: (D*E, G*E)   block-packed taps (compute_dtype); block (d, g) is
        #                     zero when gram g has no tap at shift d
        # b_ref: (1, G*E)     packed per-gram bias (f32)
        # o_ref: (Bt, E)      lane-dense output block
        xf = x_ref[...].astype(compute_dtype).reshape(M, E)            # (M, E)
        # Sequence position of every flattened row (built once, reused).
        t = jax.lax.broadcasted_iota(jnp.int32, (Bt, S, E), 1).reshape(M, E)

        acc = None                                                     # (M, G*E) f32
        for di, d in enumerate(shifts):                                # static unroll
            if d == 0:
                xs = xf
            else:
                if roll_mode == 0:
                    rolled = jnp.roll(xf, -d, axis=0)                  # safe fallback
                else:
                    rolled = pltpu.roll(xf, (roll_mode * -d) % M, 0)   # XLU rotate
                # rows whose source x[t + d] falls outside [0, S) become zero
                valid = jnp.logical_and(t + d >= 0, t + d < S)
                xs = jnp.where(valid, rolled, jnp.zeros((), rolled.dtype))
            part = jnp.dot(xs, w_ref[di * E:(di + 1) * E, :],
                           preferred_element_type=jnp.float32)         # (M, G*E)
            acc = part if acc is None else acc + part

        # max over sequence first (bias constant over S), then bias, then max
        # over grams, then tanh — numerically exact reorder of the reference.
        m = jnp.max(acc.reshape(Bt, S, G * E), axis=1) + b_ref[...]    # (Bt, G*E)
        out = m[:, 0:E]
        for g in range(1, G):                                          # max over grams
            out = jnp.maximum(out, m[:, g * E:(g + 1) * E])
        # TODO(synk): F.dropout (p=0.5, training=True by default) is stochastic;
        # eval-mode identity is applied here.
        o_ref[...] = jnp.tanh(out).astype(o_ref.dtype)                 # (Bt, E)

    def fwd(x, w_packed, bias_packed):
        return pl.pallas_call(
            kernel,
            out_shape=jax.ShapeDtypeStruct((B, E), jnp.float32),
            grid_spec=pltpu.PrefetchScalarGridSpec(
                num_scalar_prefetch=0,
                grid=(B // Bt,),
                in_specs=[
                    pl.BlockSpec((Bt, S, E), lambda b: (b, 0, 0)),
                    pl.BlockSpec((D * E, G * E), lambda b: (0, 0)),
                    pl.BlockSpec((1, G * E), lambda b: (0, 0)),
                ],
                out_specs=pl.BlockSpec((Bt, E), lambda b: (b, 0)),
            ),
            compiler_params=pltpu.CompilerParams(
                dimension_semantics=("parallel",),
                vmem_limit_bytes=vmem_limit),
        )(x, w_packed.astype(compute_dtype), bias_packed)

    return fwd, pads, shifts


def init_params(key, phrase_gram_num, embed_size):
    """Deterministic PyTorch-shaped params: xavier_normal weights, uniform bias."""
    G, E = phrase_gram_num, embed_size
    weights, biases = [], []
    for g in range(G):
        n = g + 1
        key, kw, kb = jax.random.split(key, 3)
        fan_in = fan_out = E * n
        std = math.sqrt(2.0 / (fan_in + fan_out))
        w = std * jax.random.normal(kw, (E, E, n), dtype=jnp.float32)   # (O, I, k)
        bound = 1.0 / math.sqrt(fan_in)
        b = jax.random.uniform(kb, (E,), jnp.float32, -bound, bound)
        weights.append(w)
        biases.append(b)
    return weights, biases


def pack_params(weights, biases, phrase_gram_num, embed_size, pads, shifts):
    """Block-pack taps into (D*E, G*E): block (d, g) = w_g[:, :, d+p_g]^T
    (input-major x output) or zeros if gram g has no tap at shift d. Bias -> (1, G*E)."""
    G, E = phrase_gram_num, embed_size
    D = len(shifts)
    W = np.zeros((D * E, G * E), np.float32)
    for di, d in enumerate(shifts):
        for g in range(G):
            k = d + pads[g]
            if 0 <= k < g + 1:
                W[di * E:(di + 1) * E, g * E:(g + 1) * E] = np.asarray(weights[g][:, :, k]).T
    b = np.concatenate([np.asarray(bb) for bb in biases])[None, :]       # (1, G*E)
    return jnp.asarray(W), jnp.asarray(b)


def ref_forward(x, weights, biases, pads):
    """Pure-JAX reference mirroring the PyTorch forward (dropout = identity)."""
    S = x.shape[1]
    xt = jnp.transpose(x, (0, 2, 1))                       # (B, E, S) — NCW like Conv1d
    outs = []
    for g, (w, b) in enumerate(zip(weights, biases)):
        p = pads[g]
        c = jax.lax.conv_general_dilated(
            xt, w, window_strides=(1,), padding=[(p, p)],
            dimension_numbers=("NCH", "OIH", "NCH"))
        c = c + b[None, :, None]
        c = c[:, :, :S]                                    # truncate like c[:, :, :seq_length]
        outs.append(c)
    m = jnp.max(jnp.stack(outs, axis=1), axis=1)           # max over grams
    t = jnp.tanh(m)
    return jnp.max(t, axis=2)                              # max over sequence -> (B, E)


if __name__ == "__main__":
    B, S, E, G = 2, 8, 32, 3                               # batch, seq, embed_size, grams
    key = jax.random.PRNGKey(0)
    key, kx = jax.random.split(key)
    x = jax.random.normal(kx, (B, S, E), dtype=jnp.float32)

    weights, biases = init_params(key, G, E)
    fwd, pads, shifts = make_phrase_embed(G, E, S, B)
    w_packed, bias_packed = pack_params(weights, biases, G, E, pads, shifts)

    out = jax.block_until_ready(fwd(x, w_packed, bias_packed))
    ref = ref_forward(x, weights, biases, pads)

    assert out.shape == (B, E)
    np.testing.assert_allclose(np.asarray(out), np.asarray(ref), rtol=1e-5, atol=1e-5)
    print("KERNEL_OK")
</pallas_src>

<mosaic_0001>
module attributes {stable_mosaic.version = 11 : i64} {
  func.func @k(%arg0: memref<8x128xf32, #tpu.memory_space<vmem>>, %arg1: memref<8x128xf32, #tpu.memory_space<vmem>>) attributes {dimension_semantics = [], scalar_prefetch = 0 : i64, scratch_operands = 0 : i64, tpu.core_type = #tpu.core_type<tc>} {
    %c0 = arith.constant 0 : index
    %c0_0 = arith.constant 0 : index
    %0 = vector.load %arg0[%c0, %c0_0] : memref<8x128xf32, #tpu.memory_space<vmem>>, vector<8x128xf32>
    %c1_i32 = arith.constant 1 : i32
    %1 = tpu.dynamic_rotate %0 by %c1_i32 dim 0 : vector<8x128xf32>, i32 -> vector<8x128xf32>
    %c0_1 = arith.constant 0 : index
    %c0_2 = arith.constant 0 : index
    %2 = vector.load %arg1[%c0_1, %c0_2] : memref<8x128xf32, #tpu.memory_space<vmem>>, vector<8x128xf32>
    tpu.vector_store %arg1[%c0_1, %c0_2], %1 {strides = array<i32>} : memref<8x128xf32, #tpu.memory_space<vmem>>, vector<8x128xf32>,
    return
  }
}

module attributes {stable_mosaic.version = 11 : i64} {
  func.func @kernel(%arg0: i32, %arg1: memref<2x8x32xf32, #tpu.memory_space<vmem>>, %arg2: memref<96x96xf32, #tpu.memory_space<vmem>>, %arg3: memref<1x96xf32, #tpu.memory_space<vmem>>, %arg4: memref<2x32xf32, #tpu.memory_space<vmem>>) attributes {dimension_semantics = [#tpu.dimension_semantics<parallel>], iteration_bounds = array<i64: 1>, scalar_prefetch = 0 : i64, scratch_operands = 0 : i64, tpu.core_type = #tpu.core_type<tc>, window_params = [{transform_indices = @transform_0, window_bounds = array<i64: 2, 8, 32>}, {pipeline_mode = #tpu.pipeline_mode<synchronous>, transform_indices = @transform_1, window_bounds = array<i64: 96, 96>}, {pipeline_mode = #tpu.pipeline_mode<synchronous>, transform_indices = @transform_2, window_bounds = array<i64: 1, 96>}, {transform_indices = @transform_3, window_bounds = array<i64: 2, 32>}]} {
    %c0 = arith.constant 0 : index
    %c0_0 = arith.constant 0 : index
    %c0_1 = arith.constant 0 : index
    %0 = vector.load %arg1[%c0, %c0_0, %c0_1] : memref<2x8x32xf32, #tpu.memory_space<vmem>>, vector<2x8x32xf32>
    %1 = vector.shape_cast %0 : vector<2x8x32xf32> to vector<16x32xf32>
    %2 = tpu.iota {dimensions = array<i32: 1>} : vector<2x8x32xi32>
    %3 = vector.shape_cast %2 : vector<2x8x32xi32> to vector<16x32xi32>
    %4 = vector.extract_strided_slice %1 {offsets = [15, 0], sizes = [1, 32], strides = [1, 1]} : vector<16x32xf32> to vector<1x32xf32>
    %5 = vector.extract_strided_slice %1 {offsets = [0, 0], sizes = [15, 32], strides = [1, 1]} : vector<16x32xf32> to vector<15x32xf32>
    %6 = tpu.concatenate %4, %5 in 0 : vector<1x32xf32>, vector<15x32xf32> -> vector<16x32xf32>
    %c-1_i32 = arith.constant -1 : i32
    %7 = vector.broadcast %c-1_i32 : i32 to vector<16x32xi32>
    %8 = arith.addi %3, %7 : vector<16x32xi32>
    %c0_i32 = arith.constant 0 : i32
    %9 = vector.broadcast %c0_i32 : i32 to vector<16x32xi32>
    %10 = arith.cmpi sge, %8, %9 : vector<16x32xi32>
    %c-1_i32_2 = arith.constant -1 : i32
    %11 = vector.broadcast %c-1_i32_2 : i32 to vector<16x32xi32>
    %12 = arith.addi %3, %11 : vector<16x32xi32>
    %c8_i32 = arith.constant 8 : i32
    %13 = vector.broadcast %c8_i32 : i32 to vector<16x32xi32>
    %14 = arith.cmpi slt, %12, %13 : vector<16x32xi32>
    %15 = arith.andi %10, %14 : vector<16x32xi1>
    %cst = arith.constant 0.000000e+00 : f32
    %16 = vector.broadcast %cst : f32 to vector<16x32xf32>
    %17 = arith.select %15, %6, %16 : vector<16x32xi1>, vector<16x32xf32>
    %c0_3 = arith.constant 0 : index
    %c0_4 = arith.constant 0 : index
    %18 = vector.load %arg2[%c0_3, %c0_4] : memref<96x96xf32, #tpu.memory_space<vmem>>, vector<32x96xf32>
    %cst_5 = arith.constant dense<0.000000e+00> : vector<16x96xf32>
    %19 = tpu.matmul %17, %18, %cst_5 {dimension_numbers = #tpu.dot_dimension_numbers<[1], [0], [0], [1], [0, 0, 1, 1], [], []>} : vector<16x32xf32>, vector<32x96xf32>, vector<16x96xf32> -> vector<16x96xf32>
    %c32 = arith.constant 32 : index
    %c0_6 = arith.constant 0 : index
    %20 = vector.load %arg2[%c32, %c0_6] : memref<96x96xf32, #tpu.memory_space<vmem>>, vector<32x96xf32>
    %cst_7 = arith.constant dense<0.000000e+00> : vector<16x96xf32>
    %21 = tpu.matmul %1, %20, %cst_7 {dimension_numbers = #tpu.dot_dimension_numbers<[1], [0], [0], [1], [0, 0, 1, 1], [], []>} : vector<16x32xf32>, vector<32x96xf32>, vector<16x96xf32> -> vector<16x96xf32>
    %22 = arith.addf %19, %21 : vector<16x96xf32>
    %23 = vector.extract_strided_slice %1 {offsets = [1, 0], sizes = [15, 32], strides = [1, 1]} : vector<16x32xf32> to vector<15x32xf32>
    %24 = vector.extract_strided_slice %1 {offsets = [0, 0], sizes = [1, 32], strides = [1, 1]} : vector<16x32xf32> to vector<1x32xf32>
    %25 = tpu.concatenate %23, %24 in 0 : vector<15x32xf32>, vector<1x32xf32> -> vector<16x32xf32>
    %c1_i32 = arith.constant 1 : i32
    %26 = vector.broadcast %c1_i32 : i32 to vector<16x32xi32>
    %27 = arith.addi %3, %26 : vector<16x32xi32>
    %c0_i32_8 = arith.constant 0 : i32
    %28 = vector.broadcast %c0_i32_8 : i32 to vector<16x32xi32>
    %29 = arith.cmpi sge, %27, %28 : vector<16x32xi32>
    %c1_i32_9 = arith.constant 1 : i32
    %30 = vector.broadcast %c1_i32_9 : i32 to vector<16x32xi32>
    %31 = arith.addi %3, %30 : vector<16x32xi32>
    %c8_i32_10 = arith.constant 8 : i32
    %32 = vector.broadcast %c8_i32_10 : i32 to vector<16x32xi32>
    %33 = arith.cmpi slt, %31, %32 : vector<16x32xi32>
    %34 = arith.andi %29, %33 : vector<16x32xi1>
    %cst_11 = arith.constant 0.000000e+00 : f32
    %35 = vector.broadcast %cst_11 : f32 to vector<16x32xf32>
    %36 = arith.select %34, %25, %35 : vector<16x32xi1>, vector<16x32xf32>
    %c64 = arith.constant 64 : index
    %c0_12 = arith.constant 0 : index
    %37 = vector.load %arg2[%c64, %c0_12] : memref<96x96xf32, #tpu.memory_space<vmem>>, vector<32x96xf32>
    %cst_13 = arith.constant dense<0.000000e+00> : vector<16x96xf32>
    %38 = tpu.matmul %36, %37, %cst_13 {dimension_numbers = #tpu.dot_dimension_numbers<[1], [0], [0], [1], [0, 0, 1, 1], [], []>} : vector<16x32xf32>, vector<32x96xf32>, vector<16x96xf32> -> vector<16x96xf32>
    %39 = arith.addf %22, %38 : vector<16x96xf32>
    %40 = vector.shape_cast %39 : vector<16x96xf32> to vector<2x8x96xf32>
    %cst_14 = arith.constant dense<0xFF800000> : vector<2x96xf32>
    %41 = vector.multi_reduction <maximumf>, %40, %cst_14 [1] : vector<2x8x96xf32> to vector<2x96xf32>
    %c0_15 = arith.constant 0 : index
    %c0_16 = arith.constant 0 : index
    %42 = vector.load %arg3[%c0_15, %c0_16] : memref<1x96xf32, #tpu.memory_space<vmem>>, vector<1x96xf32>
    %43 = vector.broadcast %42 : vector<1x96xf32> to vector<2x96xf32>
    %44 = arith.addf %41, %43 : vector<2x96xf32>
    %45 = vector.extract_strided_slice %44 {offsets = [0, 0], sizes = [2, 32], strides = [1, 1]} : vector<2x96xf32> to vector<2x32xf32>
    %46 = vector.extract_strided_slice %44 {offsets = [0, 32], sizes = [2, 32], strides = [1, 1]} : vector<2x96xf32> to vector<2x32xf32>
    %47 = arith.maximumf %45, %46 : vector<2x32xf32>
    %48 = vector.extract_strided_slice %44 {offsets = [0, 64], sizes = [2, 32], strides = [1, 1]} : vector<2x96xf32> to vector<2x32xf32>
    %49 = arith.maximumf %47, %48 : vector<2x32xf32>
    %50 = math.tanh %49 : vector<2x32xf32>
    %c0_17 = arith.constant 0 : index
    %c0_18 = arith.constant 0 : index
    %51 = vector.load %arg4[%c0_17, %c0_18] : memref<2x32xf32, #tpu.memory_space<vmem>>, vector<2x32xf32>
    tpu.vector_store %arg4[%c0_17, %c0_18], %50 {strides = array<i32>} : memref<2x32xf32, #tpu.memory_space<vmem>>, vector<2x32xf32>,
    return
  }
  func.func @transform_0(%arg0: i32) -> (i32, i32, i32) {
    %c0_i32 = arith.constant 0 : i32
    %c0_i32_0 = arith.constant 0 : i32
    %c0_i32_1 = arith.constant 0 : i32
    return %arg0, %c0_i32, %c0_i32_0 : i32, i32, i32
  }
  func.func @transform_1(%arg0: i32) -> (i32, i32) {
    %c0_i32 = arith.constant 0 : i32
    %c0_i32_0 = arith.constant 0 : i32
    %c0_i32_1 = arith.constant 0 : i32
    return %c0_i32, %c0_i32_0 : i32, i32
  }
  func.func @transform_2(%arg0: i32) -> (i32, i32) {
    %c0_i32 = arith.constant 0 : i32
    %c0_i32_0 = arith.constant 0 : i32
    %c0_i32_1 = arith.constant 0 : i32
    return %c0_i32, %c0_i32_0 : i32, i32
  }
  func.func @transform_3(%arg0: i32) -> (i32, i32) {
    %c0_i32 = arith.constant 0 : i32
    %c0_i32_0 = arith.constant 0 : i32
    return %arg0, %c0_i32 : i32, i32
  }
}

</mosaic_0001>

<llo_original>
// kernel: tpu_custom_call.1
$region0: #{tpu_custom_call.1}
  #allocation0 [shape = 'u32[]', space=smem, size = 0x4, offset = 0x4, fixed_abs, tag = 'smem constant byte address 0x4 - core index']
  #allocation1 [shape = 'u32[144,128]{1,0:T(1,128)}', space=vmem, size = 0x12000, scoped, tag = 'internal scratch']
  %s0 = inlined_call_operand.hbm [shape: f32[8,128], index: 0, kind: input, shape index: {}]
  %s1 = inlined_call_operand.hbm [shape: f32[8,128], index: 1, kind: output, shape index: {}]
  %s2 = sld [smem:[#allocation0]]
  $region18: #{tpu_custom_call.1} parent=0
    _
  %s4 = ssub.s32 1, %s2
  %s5 = scalar_select 0, %s4, %s2
  $region1: #{tpu_custom_call.1} parent=0
    #allocation2 [shape = 'u8[4096]{0}', space=vmem, size = 0x1000, scoped, tag = 'input window, operand 0, single buffered']
    #allocation3 [shape = 's32[1]{0}', space=sflag, size = 0x4, scoped, tag = 'scoped memory for tpu_custom_call.1']
    #allocation4 [shape = 's32[1]{0}', space=sflag, size = 0x4, scoped, tag = 'scoped memory for tpu_custom_call.1']
    #allocation5 [shape = 'u8[4096]{0}', space=vmem, size = 0x1000, scoped, tag = 'output window, operand 0, single buffered']
    %6 = vsyncpa [#allocation3], 0
    %7 = vsyncpa [#allocation4], 0
    // Predicated region
    $region2: #{tpu_custom_call.1} parent=1 // pred_check
      _
    $region3: #{tpu_custom_call.1} parent=1 // pred_check_branch
      %9 = sbr.rel (0) target = $region5
    $region4: #{tpu_custom_call.1} parent=1 // pred_region
      %s11 = ssub.s32 128, 128
      %12 = vsyncadd [#allocation3], %s11
      %s14 = sshll.u32 [#allocation2], 4
      %s15 = int_to_ptr.vmem [resolvable:$true] %s14
      %17 = dma.hbm_to_vmem [thread:$0]  %s0, 128, %s15, [#allocation3]
    $region5: #{tpu_custom_call.1} parent=1 // pred_fallthru
      _
    // Predicated region
    $region6: #{tpu_custom_call.1} parent=1 // pred_check
      _
    $region7: #{tpu_custom_call.1} parent=1 // pred_check_branch
      %19 = sbr.rel (0) target = $region9
    $region8: #{tpu_custom_call.1} parent=1 // pred_region
      %20 = dma.done [#allocation3], 128
    $region9: #{tpu_custom_call.1} parent=1 // pred_fallthru
      _
    %v21 = vld [vmem:[#allocation2] sm:$0xff]
    %v22 = vrot.slane %v21, 7
    %23 = vst [vmem:[#allocation5] sm:$0xff] %v22
    // Predicated region
    $region10: #{tpu_custom_call.1} parent=1 // pred_check
      _
    $region11: #{tpu_custom_call.1} parent=1 // pred_check_branch
      %25 = sbr.rel (0) target = $region13
    $region12: #{tpu_custom_call.1} parent=1 // pred_region
      %s27 = ssub.s32 128, 128
      %28 = vsyncadd [#allocation4], %s27
      %s30 = sshll.u32 [#allocation5], 4
      %s31 = int_to_ptr.vmem [resolvable:$true] %s30
      %33 = dma.vmem_to_hbm [thread:$0]  %s31, 128, %s1, [#allocation4]
    $region13: #{tpu_custom_call.1} parent=1 // pred_fallthru
      _
    // Predicated region
    $region14: #{tpu_custom_call.1} parent=1 // pred_check
      _
    $region15: #{tpu_custom_call.1} parent=1 // pred_check_branch
      %35 = sbr.rel (0) target = $region17
    $region16: #{tpu_custom_call.1} parent=1 // pred_region
      %36 = dma.done [#allocation4], 128
    $region17: #{tpu_custom_call.1} parent=1 // pred_fallthru
      _
    %37 = vsyncpa [#allocation3], 1
    %38 = vsyncpa [#allocation4], 1

// kernel: tpu_custom_call.1
$region0: #{tpu_custom_call.1}
  #allocation0 [shape = 'u32[]', space=smem, size = 0x4, offset = 0x4, fixed_abs, tag = 'smem constant byte address 0x4 - core index']
  #allocation1 [shape = 'u32[144,128]{1,0:T(1,128)}', space=vmem, size = 0x12000, scoped, tag = 'internal scratch']
  %s0 = inlined_call_operand.hbm [shape: f32[2,8,32], index: 0, kind: input, shape index: {}]
  %s1 = inlined_call_operand.hbm [shape: f32[96,96], index: 1, kind: input, shape index: {}]
  %s2 = inlined_call_operand.vmem [shape: f32[1,96], index: 2, kind: input, shape index: {}]
  %s3 = inlined_call_operand.hbm [shape: f32[2,32], index: 3, kind: output, shape index: {}]
  %s4 = sld [smem:[#allocation0]]
  $region30: #{tpu_custom_call.1} parent=0
    _
  %s6 = ssub.s32 1, %s4
  %s7 = scalar_select 0, %s6, %s4
  $region1: #{tpu_custom_call.1} parent=0
    #allocation2 [shape = 'u8[8192]{0}', space=vmem, size = 0x2000, scoped, tag = 'input window, operand 0, single buffered']
    #allocation3 [shape = 's32[1]{0}', space=sflag, size = 0x4, scoped, tag = 'scoped memory for tpu_custom_call.1']
    #allocation4 [shape = 's32[1]{0}', space=sflag, size = 0x4, scoped, tag = 'scoped memory for tpu_custom_call.1']
    #allocation5 [shape = 'u8[49152]{0}', space=vmem, size = 0xc000, scoped, tag = 'input window, operand 1, single buffered']
    #allocation6 [shape = 's32[1]{0}', space=sflag, size = 0x4, scoped, tag = 'scoped memory for tpu_custom_call.1']
    #allocation7 [shape = 'u8[1024]{0}', space=vmem, size = 0x400, scoped, tag = 'output window, operand 0, single buffered']
    %8 = vsyncpa [#allocation3], 0
    %9 = vsyncpa [#allocation6], 0
    %10 = vsyncpa [#allocation4], 0
    // Predicated region
    $region2: #{tpu_custom_call.1} parent=1 // pred_check
      _
    $region3: #{tpu_custom_call.1} parent=1 // pred_check_branch
      %12 = sbr.rel (0) target = $region5
    $region4: #{tpu_custom_call.1} parent=1 // pred_region
      %s14 = ssub.s32 256, 256
      %15 = vsyncadd [#allocation3], %s14
      %s16 = sshll.u32 [#allocation2], 4
      %s17 = int_to_ptr.vmem [resolvable:$true] %s16
      %22 = dma.hbm_to_vmem [thread:$0]  %s0, 256, %s17, [#allocation3], 128, 128, 8
    $region5: #{tpu_custom_call.1} parent=1 // pred_fallthru
      _
    // Predicated region
    $region6: #{tpu_custom_call.1} parent=1 // pred_check
      _
    $region7: #{tpu_custom_call.1} parent=1 // pred_check_branch
      %24 = sbr.rel (0) target = $region9
    $region8: #{tpu_custom_call.1} parent=1 // pred_region
      %s26 = ssub.s32 1536, 1536
      %27 = vsyncadd [#allocation6], %s26
      %s28 = sshll.u32 [#allocation5], 4
      %s29 = int_to_ptr.vmem [resolvable:$true] %s28
      %34 = dma.hbm_to_vmem [thread:$0]  %s1, 1536, %s29, [#allocation6], 128, 128, 8
    $region9: #{tpu_custom_call.1} parent=1 // pred_fallthru
      _
    // Predicated region
    $region10: #{tpu_custom_call.1} parent=1 // pred_check
      _
    $region11: #{tpu_custom_call.1} parent=1 // pred_check_branch
      %36 = sbr.rel (0) target = $region13
    $region12: #{tpu_custom_call.1} parent=1 // pred_region
      _
    $region13: #{tpu_custom_call.1} parent=1 // pred_fallthru
      _
    // Predicated region
    $region14: #{tpu_custom_call.1} parent=1 // pred_check
      _
    $region15: #{tpu_custom_call.1} parent=1 // pred_check_branch
      %38 = sbr.rel (0) target = $region17
    $region16: #{tpu_custom_call.1} parent=1 // pred_region
      %39 = dma.done [#allocation3], 256
    $region17: #{tpu_custom_call.1} parent=1 // pred_fallthru
      _
    // Predicated region
    $region18: #{tpu_custom_call.1} parent=1 // pred_check
      _
    $region19: #{tpu_custom_call.1} parent=1 // pred_check_branch
      %41 = sbr.rel (0) target = $region21
    $region20: #{tpu_custom_call.1} parent=1 // pred_region
      %42 = dma.done [#allocation6], 1536
    $region21: #{tpu_custom_call.1} parent=1 // pred_fallthru
      _
    %v43 = vld [vmem:[#allocation2] sm:$0xff]
    %v44 = vld [vmem:[#allocation2 + $0x8] sm:$0xff]
    %v45 = vlaneseq
    %v46 = vshrl.u32 %v45, 7
    %v48 = vrot.slane %v44, 7
    %vm51 = vcmask 1040384
    %v52 = vrot.slane %v43, 7
    %v53 = vsel %vm51, %v52, %v48
    %v56 = vsel %vm51, %v48, %v52
    %v57 = vadd.s32 %v46, 4294967295
    %vm58 = vcmp.ge.s32.totalorder %v57, 0
    %vm59 = vcmp.lt.s32.totalorder %v57, 8
    %vm60 = vmand %vm58, %vm59
    %v61 = vsel %vm60, %v56, 0.0
    %v62 = vsel %vm60, %v53, 0.0
    %v63 = vld [vmem:[#allocation5] sm:$0xff]
    %v64 = vld [vmem:[#allocation5 + $0x8] sm:$0xff]
    %v65 = vld [vmem:[#allocation5 + $0x10] sm:$0xff]
    %v66 = vld [vmem:[#allocation5 + $0x18] sm:$0xff]
    %v67 = vld [vmem:[#allocation5 + $0x20] sm:$0xff]
    %v68 = vld [vmem:[#allocation5 + $0x28] sm:$0xff]
    %v69 = vld [vmem:[#allocation5 + $0x30] sm:$0xff]
    %v70 = vld [vmem:[#allocation5 + $0x38] sm:$0xff]
    %vm71 = vcmask 261120
    %v72 = vsel %vm71, %v43, 0
    %v74 = vsel %vm71, %v44, 0
    %76 = vmatprep.subr.mxu0 0.0
    %77 = vmatpush1.msra.mxu0 %v67
    %78 = vmatprep.subr.mxu0 0.0
    %79 = vmatpush1.msra.mxu0 %v68
    %80 = vmatprep.subr.mxu0 0.0
    %81 = vmatpush1.msra.mxu0 %v69
    %82 = vmatprep.subr.mxu0 0.0
    %83 = vmatpush1.msra.mxu0 %v70
    %84 = vmatprep.subr.mxu0 0.0
    %85 = vmatpush1.msra.mxu0 0.0
    %86 = vmatprep.subr.mxu0 0.0
    %87 = vmatpush1.msra.mxu0 0.0
    %88 = vmatprep.subr.mxu0 0.0
    %89 = vmatpush1.msra.mxu0 0.0
    %90 = vmatprep.subr.mxu0 0.0
    %91 = vmatpush1.msra.mxu0 0.0
    %92 = vmatprep.subr.mxu0 0.0
    %93 = vmatpush1.msra.mxu0 0.0
    %94 = vmatprep.subr.mxu0 0.0
    %95 = vmatpush1.msra.mxu0 0.0
    %96 = vmatprep.subr.mxu0 0.0
    %97 = vmatpush1.msra.mxu0 0.0
    %98 = vmatprep.subr.mxu0 0.0
    %99 = vmatpush1.msra.mxu0 0.0
    %100 = vmatprep.subr.mxu0 0.0
    %101 = vmatpush1.msra.mxu0 0.0
    %102 = vmatprep.subr.mxu0 0.0
    %103 = vmatpush1.msra.mxu0 0.0
    %104 = vmatprep.subr.mxu0 0.0
    %105 = vmatpush1.msra.mxu0 0.0
    %106 = vmatprep.subr.mxu0 0.0
    %107 = vmatpush1.msra.mxu0 0.0
    %108 = vmatprep.subr.mxu0 0.0
    %109 = vmatpush1.msra.mxu0 0.0
    %110 = vmatprep.subr.mxu0 0.0
    %111 = vmatpush1.msra.mxu0 0.0
    %112 = vmatprep.subr.mxu0 0.0
    %113 = vmatpush1.msra.mxu0 0.0
    %114 = vmatprep.subr.mxu0 0.0
    %115 = vmatpush1.msra.mxu0 0.0
    %116 = vmatprep.subr.mxu0 0.0
    %117 = vmatpush1.msra.mxu0 0.0
    %118 = vmatprep.subr.mxu0 0.0
    %119 = vmatpush1.msra.mxu0 0.0
    %120 = vmatprep.subr.mxu0 0.0
    %121 = vmatpush1.msra.mxu0 0.0
    %122 = vmatprep.subr.mxu0 0.0
    %123 = vmatpush1.msra.mxu0 0.0
    %124 = vmatprep.subr.mxu0 0.0
    %125 = vmatpush1.msra.mxu0 0.0
    %126 = vmatprep.subr.mxu0 0.0
    %127 = vmatpush1.msra.mxu0 0.0
    %128 = vmatprep.subr.mxu0 0.0
    %129 = vmatpush1.msra.mxu0 0.0
    %130 = vmatprep.subr.mxu0 0.0
    %131 = vmatpush1.msra.mxu0 0.0
    %132 = vmatprep.subr.mxu0 0.0
    %133 = vmatpush1.msra.mxu0 0.0
    %134 = vmatprep.subr.mxu0 0.0
    %135 = vmatpush1.msra.mxu0 0.0
    %136 = vmatprep.subr.mxu0 0.0
    %137 = vmatpush1.msra.mxu0 0.0
    %138 = vmatprep.subr.mxu0 0.0
    %139 = vmatpush1.msra.mxu0 0.0
    %140 = vmatprep.mubr.f32.mxu0 0.0
    %141 = vmatmul.mubr.f32.gmra.mrb[0].mxu0 %v72
    %v142 = vpop.f32.mrb[0].mxu0
    %v143 = vadd.f32 0.0, %v142
    %v144 = vpop.f32.mrb[0].mxu0
    %145 = vmatprep.mubr.f32.mxu0 0.0
    %146 = vmatmul.mubr.f32.gmra.mrb[0].mxu0 %v74
    %v147 = vpop.f32.mrb[0].mxu0
    %v148 = vadd.f32 0.0, %v147
    %v149 = vpop.f32.mrb[0].mxu0
    %150 = vdwg.mxu0
    %v152 = vsel %vm71, %v61, 0
    %v155 = vsel %vm71, %v62, 0
    %157 = vmatprep.subr.mxu0 0.0
    %158 = vmatpush1.msra.mxu0 %v63
    %159 = vmatprep.subr.mxu0 0.0
    %160 = vmatpush1.msra.mxu0 %v64
    %161 = vmatprep.subr.mxu0 0.0
    %162 = vmatpush1.msra.mxu0 %v65
    %163 = vmatprep.subr.mxu0 0.0
    %164 = vmatpush1.msra.mxu0 %v66
    %165 = vmatprep.subr.mxu0 0.0
    %166 = vmatpush1.msra.mxu0 0.0
    %167 = vmatprep.subr.mxu0 0.0
    %168 = vmatpush1.msra.mxu0 0.0
    %169 = vmatprep.subr.mxu0 0.0
    %170 = vmatpush1.msra.mxu0 0.0
    %171 = vmatprep.subr.mxu0 0.0
    %172 = vmatpush1.msra.mxu0 0.0
    %173 = vmatprep.subr.mxu0 0.0
    %174 = vmatpush1.msra.mxu0 0.0
    %175 = vmatprep.subr.mxu0 0.0
    %176 = vmatpush1.msra.mxu0 0.0
    %177 = vmatprep.subr.mxu0 0.0
    %178 = vmatpush1.msra.mxu0 0.0
    %179 = vmatprep.subr.mxu0 0.0
    %180 = vmatpush1.msra.mxu0 0.0
    %181 = vmatprep.subr.mxu0 0.0
    %182 = vmatpush1.msra.mxu0 0.0
    %183 = vmatprep.subr.mxu0 0.0
    %184 = vmatpush1.msra.mxu0 0.0
    %185 = vmatprep.subr.mxu0 0.0
    %186 = vmatpush1.msra.mxu0 0.0
    %187 = vmatprep.subr.mxu0 0.0
    %188 = vmatpush1.msra.mxu0 0.0
    %189 = vmatprep.subr.mxu0 0.0
    %190 = vmatpush1.msra.mxu0 0.0
    %191 = vmatprep.subr.mxu0 0.0
    %192 = vmatpush1.msra.mxu0 0.0
    %193 = vmatprep.subr.mxu0 0.0
    %194 = vmatpush1.msra.mxu0 0.0
    %195 = vmatprep.subr.mxu0 0.0
    %196 = vmatpush1.msra.mxu0 0.0
    %197 = vmatprep.subr.mxu0 0.0
    %198 = vmatpush1.msra.mxu0 0.0
    %199 = vmatprep.subr.mxu0 0.0
    %200 = vmatpush1.msra.mxu0 0.0
    %201 = vmatprep.subr.mxu0 0.0
    %202 = vmatpush1.msra.mxu0 0.0
    %203 = vmatprep.subr.mxu0 0.0
    %204 = vmatpush1.msra.mxu0 0.0
    %205 = vmatprep.subr.mxu0 0.0
    %206 = vmatpush1.msra.mxu0 0.0
    %207 = vmatprep.subr.mxu0 0.0
    %208 = vmatpush1.msra.mxu0 0.0
    %209 = vmatprep.subr.mxu0 0.0
    %210 = vmatpush1.msra.mxu0 0.0
    %211 = vmatprep.subr.mxu0 0.0
    %212 = vmatpush1.msra.mxu0 0.0
    %213 = vmatprep.subr.mxu0 0.0
    %214 = vmatpush1.msra.mxu0 0.0
    %215 = vmatprep.subr.mxu0 0.0
    %216 = vmatpush1.msra.mxu0 0.0
    %217 = vmatprep.subr.mxu0 0.0
    %218 = vmatpush1.msra.mxu0 0.0
    %219 = vmatprep.subr.mxu0 0.0
    %220 = vmatpush1.msra.mxu0 0.0
    %221 = vmatprep.mubr.f32.mxu0 0.0
    %222 = vmatmul.mubr.f32.gmra.mrb[0].mxu0 %v152
    %v223 = vpop.f32.mrb[0].mxu0
    %v224 = vadd.f32 %v143, %v223
    %v225 = vpop.f32.mrb[0].mxu0
    %226 = vmatprep.mubr.f32.mxu0 0.0
    %227 = vmatmul.mubr.f32.gmra.mrb[0].mxu0 %v155
    %v228 = vpop.f32.mrb[0].mxu0
    %v229 = vadd.f32 %v148, %v228
    %v230 = vpop.f32.mrb[0].mxu0
    %231 = vdwg.mxu0
    %vm232 = vcmask 1046528
    %v233 = vrot.slane %v43, 1
    %v234 = vrot.slane %v44, 1
    %v235 = vsel %vm232, %v233, %v234
    %v239 = vsel %vm232, %v234, %v233
    %v240 = vadd.s32 %v46, 1
    %vm241 = vcmp.ge.s32.totalorder %v240, 0
    %vm242 = vcmp.lt.s32.totalorder %v240, 8
    %vm243 = vmand %vm241, %vm242
    %v244 = vsel %vm243, %v235, 0.0
    %v245 = vsel %vm243, %v239, 0.0
    %v246 = vld [vmem:[#allocation5 + $0x40] sm:$0xff]
    %v247 = vld [vmem:[#allocation5 + $0x48] sm:$0xff]
    %v248 = vld [vmem:[#allocation5 + $0x50] sm:$0xff]
    %v249 = vld [vmem:[#allocation5 + $0x58] sm:$0xff]
    %v251 = vsel %vm71, %v244, 0
    %v254 = vsel %vm71, %v245, 0
    %256 = vmatprep.subr.mxu0 0.0
    %257 = vmatpush1.msra.mxu0 %v246
    %258 = vmatprep.subr.mxu0 0.0
    %259 = vmatpush1.msra.mxu0 %v247
    %260 = vmatprep.subr.mxu0 0.0
    %261 = vmatpush1.msra.mxu0 %v248
    %262 = vmatprep.subr.mxu0 0.0
    %263 = vmatpush1.msra.mxu0 %v249
    %264 = vmatprep.subr.mxu0 0.0
    %265 = vmatpush1.msra.mxu0 0.0
    %266 = vmatprep.subr.mxu0 0.0
    %267 = vmatpush1.msra.mxu0 0.0
    %268 = vmatprep.subr.mxu0 0.0
    %269 = vmatpush1.msra.mxu0 0.0
    %270 = vmatprep.subr.mxu0 0.0
    %271 = vmatpush1.msra.mxu0 0.0
    %272 = vmatprep.subr.mxu0 0.0
    %273 = vmatpush1.msra.mxu0 0.0
    %274 = vmatprep.subr.mxu0 0.0
    %275 = vmatpush1.msra.mxu0 0.0
    %276 = vmatprep.subr.mxu0 0.0
    %277 = vmatpush1.msra.mxu0 0.0
    %278 = vmatprep.subr.mxu0 0.0
    %279 = vmatpush1.msra.mxu0 0.0
    %280 = vmatprep.subr.mxu0 0.0
    %281 = vmatpush1.msra.mxu0 0.0
    %282 = vmatprep.subr.mxu0 0.0
    %283 = vmatpush1.msra.mxu0 0.0
    %284 = vmatprep.subr.mxu0 0.0
    %285 = vmatpush1.msra.mxu0 0.0
    %286 = vmatprep.subr.mxu0 0.0
    %287 = vmatpush1.msra.mxu0 0.0
    %288 = vmatprep.subr.mxu0 0.0
    %289 = vmatpush1.msra.mxu0 0.0
    %290 = vmatprep.subr.mxu0 0.0
    %291 = vmatpush1.msra.mxu0 0.0
    %292 = vmatprep.subr.mxu0 0.0
    %293 = vmatpush1.msra.mxu0 0.0
    %294 = vmatprep.subr.mxu0 0.0
    %295 = vmatpush1.msra.mxu0 0.0
    %296 = vmatprep.subr.mxu0 0.0
    %297 = vmatpush1.msra.mxu0 0.0
    %298 = vmatprep.subr.mxu0 0.0
    %299 = vmatpush1.msra.mxu0 0.0
    %300 = vmatprep.subr.mxu0 0.0
    %301 = vmatpush1.msra.mxu0 0.0
    %302 = vmatprep.subr.mxu0 0.0
    %303 = vmatpush1.msra.mxu0 0.0
    %304 = vmatprep.subr.mxu0 0.0
    %305 = vmatpush1.msra.mxu0 0.0
    %306 = vmatprep.subr.mxu0 0.0
    %307 = vmatpush1.msra.mxu0 0.0
    %308 = vmatprep.subr.mxu0 0.0
    %309 = vmatpush1.msra.mxu0 0.0
    %310 = vmatprep.subr.mxu0 0.0
    %311 = vmatpush1.msra.mxu0 0.0
    %312 = vmatprep.subr.mxu0 0.0
    %313 = vmatpush1.msra.mxu0 0.0
    %314 = vmatprep.subr.mxu0 0.0
    %315 = vmatpush1.msra.mxu0 0.0
    %316 = vmatprep.subr.mxu0 0.0
    %317 = vmatpush1.msra.mxu0 0.0
    %318 = vmatprep.subr.mxu0 0.0
    %319 = vmatpush1.msra.mxu0 0.0
    %320 = vmatprep.mubr.f32.mxu0 0.0
    %321 = vmatmul.mubr.f32.gmra.mrb[0].mxu0 %v251
    %v322 = vpop.f32.mrb[0].mxu0
    %v323 = vadd.f32 0.0, %v322
    %v324 = vpop.f32.mrb[0].mxu0
    %325 = vmatprep.mubr.f32.mxu0 0.0
    %326 = vmatmul.mubr.f32.gmra.mrb[0].mxu0 %v254
    %v327 = vpop.f32.mrb[0].mxu0
    %v328 = vadd.f32 0.0, %v327
    %v329 = vpop.f32.mrb[0].mxu0
    %330 = vdwg.mxu0
    %v331 = vadd.f32 %v224, %v323
    %v332 = vadd.f32 %v229, %v328
    %vm333 = vcmask 785408
    %v334 = vsel %vm333, %v331, -inf
    %v335 = vrot.slane %v334, 4
    %v336 = vmax.f32 %v334, %v335
    %v337 = vrot.slane %v336, 2
    %v338 = vmax.f32 %v336, %v337
    %v339 = vrot.slane %v338, 1
    %v340 = vmax.f32 %v338, %v339
    %v341 = vsel %vm333, %v332, -inf
    %v342 = vrot.slane %v341, 4
    %v343 = vmax.f32 %v341, %v342
    %v344 = vrot.slane %v343, 2
    %v345 = vmax.f32 %v343, %v344
    %v346 = vrot.slane %v345, 1
    %v347 = vmax.f32 %v345, %v346
    %v348 = vld [vmem:[%s2] sm:$0x1]
    %v350 = vlaneseq
    %v351 = vshrl.u32 %v350, 7
    %v352 = vsub.s32 0, %v351
    %v353 = vrot.slane %v348, %v352
    %v355 = vadd.f32 %v340, %v353
    %v356 = vadd.f32 %v347, %v353
    %359 = vrot.lane.b32.xlu0 %v355, 96
    %v360 = vpop.permute.xlu0 %359
    %361 = vrot.lane.b32.xlu0 %v356, 96
    %v362 = vpop.permute.xlu0 %361
    %v365 = vmax.f32 %v355, %v360
    %v366 = vmax.f32 %v356, %v362
    %367 = vrot.lane.b32.xlu0 %v355, 64
    %v368 = vpop.permute.xlu0 %367
    %369 = vrot.lane.b32.xlu0 %v356, 64
    %v370 = vpop.permute.xlu0 %369
    %v373 = vmax.f32 %v365, %v368
    %v374 = vmax.f32 %v366, %v370
    %v375 = vtanh.pop %v373
    %v376 = vtanh.pop %v374
    %v379 = vrot.slane %v376, 7
    %vm380 = vcmask 1041409
    %v381 = vsel %vm380, %v379, %v375
    %vm383 = vcmask 254976
    %384 = vst.msk [vmem:[#allocation7] sm:$0x3] %vm383, %v381
    // Predicated region
    $region22: #{tpu_custom_call.1} parent=1 // pred_check
      _
    $region23: #{tpu_custom_call.1} parent=1 // pred_check_branch
      %386 = sbr.rel (0) target = $region25
    $region24: #{tpu_custom_call.1} parent=1 // pred_region
      %s388 = ssub.s32 32, 32
      %389 = vsyncadd [#allocation4], %s388
      %s391 = sshll.u32 [#allocation7], 4
      %s392 = int_to_ptr.vmem [resolvable:$true] %s391
      %394 = dma.vmem_to_hbm [thread:$0]  %s392, 32, %s3, [#allocation4]
    $region25: #{tpu_custom_call.1} parent=1 // pred_fallthru
      _
    // Predicated region
    $region26: #{tpu_custom_call.1} parent=1 // pred_check
      _
    $region27: #{tpu_custom_call.1} parent=1 // pred_check_branch
      %396 = sbr.rel (0) target = $region29
    $region28: #{tpu_custom_call.1} parent=1 // pred_region
      %397 = dma.done [#allocation4], 32
    $region29: #{tpu_custom_call.1} parent=1 // pred_fallthru
      _
    %398 = vsyncpa [#allocation3], 1
    %399 = vsyncpa [#allocation6], 1
    %400 = vsyncpa [#allocation4], 1

</llo_original>
